<compile_context>
chip_gen: v6e
topology: v6e:2x2x1
jax: 0.10.0
libtpu: 0.0.40
codegen_flags: <defaults>
</compile_context>

<pallas_src>
import math

import jax
import jax.numpy as jnp
from jax import lax
from jax.experimental import pallas as pl
from jax.experimental.pallas import tpu as pltpu

_NEG_HALF_LOG_2PI = -0.5 * math.log(2.0 * math.pi)
_LOG_2 = math.log(2.0)


def agent_fwd_kernel(z_ref,
                     state_ref,
                     w1_ref, b1_ref,
                     w2_ref, b2_ref,
                     wh_ref, bh_ref,
                     out_ref):
    # out_ref block is (2*action_dim, tile_b): rows [0:A) = action, [A:2A) = log_prob.
    a = out_ref.shape[0] // 2
    cd = w1_ref.dtype  # compute dtype for MXU inputs (bf16 by default)

    x = state_ref[...]  # (tile_b, state_dim), already in compute dtype

    # h1 = W1 @ x^T : contract the state_dim axis of BOTH operands so the batch
    # lands on the 128-lane axis without transposing x (A @ B^T form on the MXU).
    h1 = lax.dot_general(w1_ref[...], x, (((1,), (1,)), ((), ())),
                         preferred_element_type=jnp.float32) + b1_ref[...]
    h1 = jnp.maximum(h1, 0.0)                                  # (64, tile_b) f32

    h2 = jnp.dot(w2_ref[...], h1.astype(cd),
                 preferred_element_type=jnp.float32) + b2_ref[...]
    h2 = jnp.maximum(h2, 0.0)                                  # (32, tile_b) f32

    # Fused heads: rows [0:A) = 2*mean (scale folded into weights), [A:2A) = log_std.
    head = jnp.dot(wh_ref[...], h2.astype(cd),
                   preferred_element_type=jnp.float32) + bh_ref[...]  # (2A, tile_b)

    mean = head[:a, :]
    log_std = head[a:, :]
    std = jnp.exp(log_std)

    # Scalar standard-normal sample (same scalar everywhere, matching
    # torch.distributions.Normal(0,1).sample()).
    z = z_ref[0]

    y = mean + std * z
    # Normal(0,1).log_prob(z) - log(std);  log(exp(log_std)) == log_std exactly.
    log_prob = (-0.5 * z * z + _NEG_HALF_LOG_2PI) - log_std
    y = jnp.tanh(y)
    log_prob = log_prob - jnp.log(1.0 - y * y + 1e-6)
    y = y * 2.0
    log_prob = log_prob - _LOG_2

    # Lane-dense stores into sublane ranges (no concatenate, no masked lanes).
    out_ref[:a, :] = y
    out_ref[a:, :] = log_prob


def _choose_tile_b(batch, requested):
    """Pick a batch tile: full-extent for small batches, 128-aligned otherwise,
    and guarantee >= 2 grid steps for large batches (v7x two-TensorCore split)."""
    if batch < 256:
        return batch
    t = min(requested, (batch + 1) // 2)
    t = max(128, (t // 128) * 128)
    return t


def agent_forward(state, z, params, *, tile_b=4096, compute_dtype=jnp.bfloat16):
    """state: (B, state_dim) f32; z: (1,) f32 scalar N(0,1) sample; params: dict
    with PyTorch-layout weights w (out, in) and biases b (out,)."""
    B, state_dim = state.shape
    h1_dim = params["w1"].shape[0]
    h2_dim = params["w2"].shape[0]
    action_dim = params["wm"].shape[0]
    a2 = 2 * action_dim
    cd = compute_dtype

    # One-time packing (not per grid step): fuse heads, fold the exact 2x mean
    # scale, cast matmul operands to the compute dtype, keep biases f32 (out, 1).
    w1 = params["w1"].astype(cd)                                            # (64, S)
    w2 = params["w2"].astype(cd)                                            # (32, 64)
    wh = jnp.concatenate([2.0 * params["wm"], params["ws"]], axis=0).astype(cd)  # (2A, 32)
    b1 = params["b1"].reshape(h1_dim, 1).astype(jnp.float32)
    b2 = params["b2"].reshape(h2_dim, 1).astype(jnp.float32)
    bh = jnp.concatenate([2.0 * params["bm"], params["bs"]],
                         axis=0).reshape(a2, 1).astype(jnp.float32)
    x = state.astype(cd)  # halves the dominant HBM read when cd == bf16

    tile_b = _choose_tile_b(B, tile_b)
    grid = (pl.cdiv(B, tile_b),)

    resident = lambda i, z_ref: (0, 0)  # weights/biases stay pinned in VMEM

    out = pl.pallas_call(
        agent_fwd_kernel,
        out_shape=jax.ShapeDtypeStruct((a2, B), jnp.float32),
        grid_spec=pltpu.PrefetchScalarGridSpec(
            num_scalar_prefetch=1,  # z -> SMEM before the grid runs
            grid=grid,
            in_specs=[
                pl.BlockSpec((tile_b, state_dim), lambda i, z_ref: (i, 0)),
                pl.BlockSpec((h1_dim, state_dim), resident),
                pl.BlockSpec((h1_dim, 1), resident),
                pl.BlockSpec((h2_dim, h1_dim), resident),
                pl.BlockSpec((h2_dim, 1), resident),
                pl.BlockSpec((a2, h2_dim), resident),
                pl.BlockSpec((a2, 1), resident),
            ],
            out_specs=pl.BlockSpec((a2, tile_b), lambda i, z_ref: (0, i)),
        ),
        compiler_params=pltpu.CompilerParams(
            dimension_semantics=("parallel",)),  # lets both v7x TCs take grid steps
    )(
        z,
        x,
        w1, b1,
        w2, b2,
        wh, bh,
    )

    y = out[:action_dim, :].T        # (B, action_dim)
    log_prob = out[action_dim:, :].T
    return y, log_prob


def init_params(key, state_dim, action_dim):
    """Deterministic init mimicking PyTorch nn.Linear defaults, PyTorch layout:
    weights (out_features, in_features), biases (out_features,)."""
    def linear(k, fan_in, fan_out):
        kw, kb = jax.random.split(k)
        bound = 1.0 / math.sqrt(fan_in)
        w = jax.random.uniform(kw, (fan_out, fan_in), jnp.float32, -bound, bound)
        b = jax.random.uniform(kb, (fan_out,), jnp.float32, -bound, bound)
        return w, b

    k1, k2, k3, k4 = jax.random.split(key, 4)
    w1, b1 = linear(k1, state_dim, 64)
    w2, b2 = linear(k2, 64, 32)
    wm, bm = linear(k3, 32, action_dim)
    ws, bs = linear(k4, 32, action_dim)
    return {"w1": w1, "b1": b1, "w2": w2, "b2": b2,
            "wm": wm, "bm": bm, "ws": ws, "bs": bs}


def reference_forward(state, z, p, compute_dtype=jnp.float32):
    """Pure-JAX reference of the original (unfused, unfolded) forward pass.
    `compute_dtype` applies the same matmul-input casts as the kernel."""
    cd = compute_dtype
    f32 = jnp.float32
    x = state.astype(cd)
    h1 = jnp.maximum(jnp.dot(x, p["w1"].astype(cd).T,
                             preferred_element_type=f32) + p["b1"], 0.0)
    h2 = jnp.maximum(jnp.dot(h1.astype(cd), p["w2"].astype(cd).T,
                             preferred_element_type=f32) + p["b2"], 0.0)
    mean = 2.0 * (jnp.dot(h2.astype(cd), p["wm"].astype(cd).T,
                          preferred_element_type=f32) + p["bm"])
    log_std = jnp.dot(h2.astype(cd), p["ws"].astype(cd).T,
                      preferred_element_type=f32) + p["bs"]
    std = jnp.exp(log_std)
    zz = z[0]
    y = mean + std * zz
    log_prob = (-0.5 * zz * zz - 0.5 * jnp.log(2.0 * jnp.pi)) - jnp.log(std)
    y = jnp.tanh(y)
    log_prob = log_prob - jnp.log(1.0 - y * y + 1e-6)
    y = y * 2.0
    log_prob = log_prob - math.log(2.0)
    return y, log_prob


if __name__ == "__main__":
    B = 8
    STATE_DIM = 16
    ACTION_DIM = 4

    key = jax.random.PRNGKey(0)
    k_state, k_z, k_params = jax.random.split(key, 3)

    state = jax.random.normal(k_state, (B, STATE_DIM), jnp.float32)
    z = jax.random.normal(k_z, (1,), jnp.float32)  # scalar N(0,1) sample
    params = init_params(k_params, STATE_DIM, ACTION_DIM)

    # Full-precision path: tight check against the f32 reference.
    y32, lp32 = agent_forward(state, z, params, compute_dtype=jnp.float32)
    y32 = jax.block_until_ready(y32)
    lp32 = jax.block_until_ready(lp32)
    y_ref, lp_ref = reference_forward(state, z, params, compute_dtype=jnp.float32)
    assert jnp.allclose(y32, y_ref, atol=1e-5, rtol=1e-5), "action mismatch (f32)"
    assert jnp.allclose(lp32, lp_ref, atol=1e-4, rtol=1e-4), "log_prob mismatch (f32)"

    # Default (bf16 matmul inputs) path: check against the bf16-matched reference.
    y16, lp16 = agent_forward(state, z, params)  # compute_dtype=jnp.bfloat16
    y16 = jax.block_until_ready(y16)
    lp16 = jax.block_until_ready(lp16)
    y_ref16, lp_ref16 = reference_forward(state, z, params,
                                          compute_dtype=jnp.bfloat16)
    assert jnp.allclose(y16, y_ref16, atol=1e-4, rtol=1e-4), "action mismatch (bf16)"
    assert jnp.allclose(lp16, lp_ref16, atol=1e-3, rtol=1e-3), "log_prob mismatch (bf16)"

    print("KERNEL_OK")
</pallas_src>

<mosaic_0001>
module attributes {stable_mosaic.version = 11 : i64} {
  func.func @agent_fwd_kernel(%arg0: i32, %arg1: memref<1xf32, #tpu.memory_space<smem>>, %arg2: memref<8x16xf32, #tpu.memory_space<vmem>>, %arg3: memref<64x16xf32, #tpu.memory_space<vmem>>, %arg4: memref<64x1xf32, #tpu.memory_space<vmem>>, %arg5: memref<32x64xf32, #tpu.memory_space<vmem>>, %arg6: memref<32x1xf32, #tpu.memory_space<vmem>>, %arg7: memref<8x32xf32, #tpu.memory_space<vmem>>, %arg8: memref<8x1xf32, #tpu.memory_space<vmem>>, %arg9: memref<8x8xf32, #tpu.memory_space<vmem>>) attributes {dimension_semantics = [#tpu.dimension_semantics<parallel>], iteration_bounds = array<i64: 1>, scalar_prefetch = 1 : i64, scratch_operands = 0 : i64, tpu.core_type = #tpu.core_type<tc>, window_params = [{transform_indices = @transform_0, window_bounds = array<i64: 8, 16>}, {pipeline_mode = #tpu.pipeline_mode<synchronous>, transform_indices = @transform_1, window_bounds = array<i64: 64, 16>}, {pipeline_mode = #tpu.pipeline_mode<synchronous>, transform_indices = @transform_2, window_bounds = array<i64: 64, 1>}, {pipeline_mode = #tpu.pipeline_mode<synchronous>, transform_indices = @transform_3, window_bounds = array<i64: 32, 64>}, {pipeline_mode = #tpu.pipeline_mode<synchronous>, transform_indices = @transform_4, window_bounds = array<i64: 32, 1>}, {pipeline_mode = #tpu.pipeline_mode<synchronous>, transform_indices = @transform_5, window_bounds = array<i64: 8, 32>}, {pipeline_mode = #tpu.pipeline_mode<synchronous>, transform_indices = @transform_6, window_bounds = array<i64: 8, 1>}, {transform_indices = @transform_7, window_bounds = array<i64: 8, 8>}]} {
    %c0 = arith.constant 0 : index
    %c0_0 = arith.constant 0 : index
    %0 = vector.load %arg2[%c0, %c0_0] : memref<8x16xf32, #tpu.memory_space<vmem>>, vector<8x16xf32>
    %c0_1 = arith.constant 0 : index
    %c0_2 = arith.constant 0 : index
    %1 = vector.load %arg3[%c0_1, %c0_2] : memref<64x16xf32, #tpu.memory_space<vmem>>, vector<64x16xf32>
    %cst = arith.constant dense<0.000000e+00> : vector<64x8xf32>
    %2 = tpu.matmul %1, %0, %cst {dimension_numbers = #tpu.dot_dimension_numbers<[1], [1], [0], [0], [0, 0, 1, 0], [], []>} : vector<64x16xf32>, vector<8x16xf32>, vector<64x8xf32> -> vector<64x8xf32>
    %c0_3 = arith.constant 0 : index
    %c0_4 = arith.constant 0 : index
    %3 = vector.load %arg4[%c0_3, %c0_4] : memref<64x1xf32, #tpu.memory_space<vmem>>, vector<64x1xf32>
    %4 = vector.broadcast %3 : vector<64x1xf32> to vector<64x8xf32>
    %5 = arith.addf %2, %4 : vector<64x8xf32>
    %cst_5 = arith.constant 0.000000e+00 : f32
    %6 = vector.broadcast %cst_5 : f32 to vector<64x8xf32>
    %7 = arith.maximumf %5, %6 : vector<64x8xf32>
    %c0_6 = arith.constant 0 : index
    %c0_7 = arith.constant 0 : index
    %8 = vector.load %arg5[%c0_6, %c0_7] : memref<32x64xf32, #tpu.memory_space<vmem>>, vector<32x64xf32>
    %cst_8 = arith.constant dense<0.000000e+00> : vector<32x8xf32>
    %9 = tpu.matmul %8, %7, %cst_8 {dimension_numbers = #tpu.dot_dimension_numbers<[1], [0], [0], [1], [0, 0, 1, 1], [], []>} : vector<32x64xf32>, vector<64x8xf32>, vector<32x8xf32> -> vector<32x8xf32>
    %c0_9 = arith.constant 0 : index
    %c0_10 = arith.constant 0 : index
    %10 = vector.load %arg6[%c0_9, %c0_10] : memref<32x1xf32, #tpu.memory_space<vmem>>, vector<32x1xf32>
    %11 = vector.broadcast %10 : vector<32x1xf32> to vector<32x8xf32>
    %12 = arith.addf %9, %11 : vector<32x8xf32>
    %cst_11 = arith.constant 0.000000e+00 : f32
    %13 = vector.broadcast %cst_11 : f32 to vector<32x8xf32>
    %14 = arith.maximumf %12, %13 : vector<32x8xf32>
    %c0_12 = arith.constant 0 : index
    %c0_13 = arith.constant 0 : index
    %15 = vector.load %arg7[%c0_12, %c0_13] : memref<8x32xf32, #tpu.memory_space<vmem>>, vector<8x32xf32>
    %cst_14 = arith.constant dense<0.000000e+00> : vector<8x8xf32>
    %16 = tpu.matmul %15, %14, %cst_14 {dimension_numbers = #tpu.dot_dimension_numbers<[1], [0], [0], [1], [0, 0, 1, 1], [], []>} : vector<8x32xf32>, vector<32x8xf32>, vector<8x8xf32> -> vector<8x8xf32>
    %c0_15 = arith.constant 0 : index
    %c0_16 = arith.constant 0 : index
    %17 = vector.load %arg8[%c0_15, %c0_16] : memref<8x1xf32, #tpu.memory_space<vmem>>, vector<8x1xf32>
    %18 = vector.broadcast %17 : vector<8x1xf32> to vector<8x8xf32>
    %19 = arith.addf %16, %18 : vector<8x8xf32>
    %20 = vector.extract_strided_slice %19 {offsets = [0, 0], sizes = [4, 8], strides = [1, 1]} : vector<8x8xf32> to vector<4x8xf32>
    %21 = vector.extract_strided_slice %19 {offsets = [4, 0], sizes = [4, 8], strides = [1, 1]} : vector<8x8xf32> to vector<4x8xf32>
    %22 = math.exp %21 : vector<4x8xf32>
    %c0_17 = arith.constant 0 : index
    %23 = memref.load %arg1[%c0_17] : memref<1xf32, #tpu.memory_space<smem>>
    %24 = vector.broadcast %23 : f32 to vector<4x8xf32>
    %25 = arith.mulf %22, %24 : vector<4x8xf32>
    %26 = arith.addf %20, %25 : vector<4x8xf32>
    %cst_18 = arith.constant -5.000000e-01 : f32
    %27 = arith.mulf %cst_18, %23 : f32
    %28 = arith.mulf %27, %23 : f32
    %cst_19 = arith.constant -0.918938517 : f32
    %29 = arith.addf %28, %cst_19 : f32
    %30 = vector.broadcast %29 : f32 to vector<4x8xf32>
    %31 = arith.subf %30, %21 : vector<4x8xf32>
    %32 = math.tanh %26 : vector<4x8xf32>
    %33 = arith.mulf %32, %32 : vector<4x8xf32>
    %cst_20 = arith.constant 1.000000e+00 : f32
    %34 = vector.broadcast %cst_20 : f32 to vector<4x8xf32>
    %35 = arith.subf %34, %33 : vector<4x8xf32>
    %cst_21 = arith.constant 9.99999997E-7 : f32
    %36 = vector.broadcast %cst_21 : f32 to vector<4x8xf32>
    %37 = arith.addf %35, %36 : vector<4x8xf32>
    %38 = math.log %37 : vector<4x8xf32>
    %39 = arith.subf %31, %38 : vector<4x8xf32>
    %cst_22 = arith.constant 2.000000e+00 : f32
    %40 = vector.broadcast %cst_22 : f32 to vector<4x8xf32>
    %41 = arith.mulf %32, %40 : vector<4x8xf32>
    %cst_23 = arith.constant 0.693147182 : f32
    %42 = vector.broadcast %cst_23 : f32 to vector<4x8xf32>
    %43 = arith.subf %39, %42 : vector<4x8xf32>
    %c0_24 = arith.constant 0 : index
    %c0_25 = arith.constant 0 : index
    %44 = vector.load %arg9[%c0_24, %c0_25] : memref<8x8xf32, #tpu.memory_space<vmem>>, vector<4x8xf32>
    tpu.vector_store %arg9[%c0_24, %c0_25], %41 {strides = array<i32>} : memref<8x8xf32, #tpu.memory_space<vmem>>, vector<4x8xf32>,
    %c4 = arith.constant 4 : index
    %c0_26 = arith.constant 0 : index
    %45 = vector.load %arg9[%c4, %c0_26] : memref<8x8xf32, #tpu.memory_space<vmem>>, vector<4x8xf32>
    tpu.vector_store %arg9[%c4, %c0_26], %43 {strides = array<i32>} : memref<8x8xf32, #tpu.memory_space<vmem>>, vector<4x8xf32>,
    return
  }
  func.func @transform_0(%arg0: i32, %arg1: memref<1xf32, #tpu.memory_space<smem>>) -> (i32, i32) {
    %c0_i32 = arith.constant 0 : i32
    %c0_i32_0 = arith.constant 0 : i32
    return %arg0, %c0_i32 : i32, i32
  }
  func.func @transform_1(%arg0: i32, %arg1: memref<1xf32, #tpu.memory_space<smem>>) -> (i32, i32) {
    %c0_i32 = arith.constant 0 : i32
    %c0_i32_0 = arith.constant 0 : i32
    %c0_i32_1 = arith.constant 0 : i32
    return %c0_i32, %c0_i32_0 : i32, i32
  }
  func.func @transform_2(%arg0: i32, %arg1: memref<1xf32, #tpu.memory_space<smem>>) -> (i32, i32) {
    %c0_i32 = arith.constant 0 : i32
    %c0_i32_0 = arith.constant 0 : i32
    %c0_i32_1 = arith.constant 0 : i32
    return %c0_i32, %c0_i32_0 : i32, i32
  }
  func.func @transform_3(%arg0: i32, %arg1: memref<1xf32, #tpu.memory_space<smem>>) -> (i32, i32) {
    %c0_i32 = arith.constant 0 : i32
    %c0_i32_0 = arith.constant 0 : i32
    %c0_i32_1 = arith.constant 0 : i32
    return %c0_i32, %c0_i32_0 : i32, i32
  }
  func.func @transform_4(%arg0: i32, %arg1: memref<1xf32, #tpu.memory_space<smem>>) -> (i32, i32) {
    %c0_i32 = arith.constant 0 : i32
    %c0_i32_0 = arith.constant 0 : i32
    %c0_i32_1 = arith.constant 0 : i32
    return %c0_i32, %c0_i32_0 : i32, i32
  }
  func.func @transform_5(%arg0: i32, %arg1: memref<1xf32, #tpu.memory_space<smem>>) -> (i32, i32) {
    %c0_i32 = arith.constant 0 : i32
    %c0_i32_0 = arith.constant 0 : i32
    %c0_i32_1 = arith.constant 0 : i32
    return %c0_i32, %c0_i32_0 : i32, i32
  }
  func.func @transform_6(%arg0: i32, %arg1: memref<1xf32, #tpu.memory_space<smem>>) -> (i32, i32) {
    %c0_i32 = arith.constant 0 : i32
    %c0_i32_0 = arith.constant 0 : i32
    %c0_i32_1 = arith.constant 0 : i32
    return %c0_i32, %c0_i32_0 : i32, i32
  }
  func.func @transform_7(%arg0: i32, %arg1: memref<1xf32, #tpu.memory_space<smem>>) -> (i32, i32) {
    %c0_i32 = arith.constant 0 : i32
    %c0_i32_0 = arith.constant 0 : i32
    return %c0_i32, %arg0 : i32, i32
  }
}

</mosaic_0001>

<llo_original>
// kernel: tpu_custom_call.1
$region0: #{tpu_custom_call.1}
  #allocation0 [shape = 'u32[]', space=smem, size = 0x4, offset = 0x4, fixed_abs, tag = 'smem constant byte address 0x4 - core index']
  #allocation1 [shape = 'u32[144,128]{1,0:T(1,128)}', space=vmem, size = 0x12000, scoped, tag = 'internal scratch']
  #allocation2 [shape = 's32[1]{0}', space=sflag, size = 0x4, scoped, tag = 'scoped memory for tpu_custom_call.1']
  #allocation3 [shape = 'f32[1]{0:T(128)S(6)}', space=smem, size = 0x200, scoped, tag = 'prefetched SMEM operand 0']
  %s0 = inlined_call_operand.<no memory space> [shape: f32[1], index: 0, kind: input, shape index: {}]
  %s1 = inlined_call_operand.vmem [shape: f32[8,16], index: 1, kind: input, shape index: {}]
  %s2 = inlined_call_operand.vmem [shape: f32[64,16], index: 2, kind: input, shape index: {}]
  %s3 = inlined_call_operand.vmem [shape: f32[64,1], index: 3, kind: input, shape index: {}]
  %s4 = inlined_call_operand.vmem [shape: f32[32,64], index: 4, kind: input, shape index: {}]
  %s5 = inlined_call_operand.vmem [shape: f32[32,1], index: 5, kind: input, shape index: {}]
  %s6 = inlined_call_operand.vmem [shape: f32[8,32], index: 6, kind: input, shape index: {}]
  %s7 = inlined_call_operand.vmem [shape: f32[8,1], index: 7, kind: input, shape index: {}]
  %s8 = inlined_call_operand.hbm [shape: f32[8,8], index: 8, kind: output, shape index: {}]
  %s9 = sld [smem:[#allocation0]]
  $region38: #{tpu_custom_call.1} parent=0
    _
  %s11 = ssub.s32 1, %s9
  %s12 = scalar_select 0, %s11, %s9
  %13 = sst [smem:[#allocation3]] %s0
  $region1: #{tpu_custom_call.1} parent=0
    #allocation4 [shape = 'u8[4096]{0}', space=vmem, size = 0x1000, scoped, tag = 'output window, operand 0, single buffered']
    #allocation5 [shape = 's32[1]{0}', space=sflag, size = 0x4, scoped, tag = 'scoped memory for tpu_custom_call.1']
    %14 = vsyncpa [#allocation5], 0
    // Predicated region
    $region2: #{tpu_custom_call.1} parent=1 // pred_check
      _
    $region3: #{tpu_custom_call.1} parent=1 // pred_check_branch
      %16 = sbr.rel (0) target = $region5
    $region4: #{tpu_custom_call.1} parent=1 // pred_region
      _
    $region5: #{tpu_custom_call.1} parent=1 // pred_fallthru
      _
    // Predicated region
    $region6: #{tpu_custom_call.1} parent=1 // pred_check
      _
    $region7: #{tpu_custom_call.1} parent=1 // pred_check_branch
      %18 = sbr.rel (0) target = $region9
    $region8: #{tpu_custom_call.1} parent=1 // pred_region
      _
    $region9: #{tpu_custom_call.1} parent=1 // pred_fallthru
      _
    // Predicated region
    $region10: #{tpu_custom_call.1} parent=1 // pred_check
      _
    $region11: #{tpu_custom_call.1} parent=1 // pred_check_branch
      %20 = sbr.rel (0) target = $region13
    $region12: #{tpu_custom_call.1} parent=1 // pred_region
      _
    $region13: #{tpu_custom_call.1} parent=1 // pred_fallthru
      _
    // Predicated region
    $region14: #{tpu_custom_call.1} parent=1 // pred_check
      _
    $region15: #{tpu_custom_call.1} parent=1 // pred_check_branch
      %22 = sbr.rel (0) target = $region17
    $region16: #{tpu_custom_call.1} parent=1 // pred_region
      _
    $region17: #{tpu_custom_call.1} parent=1 // pred_fallthru
      _
    // Predicated region
    $region18: #{tpu_custom_call.1} parent=1 // pred_check
      _
    $region19: #{tpu_custom_call.1} parent=1 // pred_check_branch
      %24 = sbr.rel (0) target = $region21
    $region20: #{tpu_custom_call.1} parent=1 // pred_region
      _
    $region21: #{tpu_custom_call.1} parent=1 // pred_fallthru
      _
    // Predicated region
    $region22: #{tpu_custom_call.1} parent=1 // pred_check
      _
    $region23: #{tpu_custom_call.1} parent=1 // pred_check_branch
      %26 = sbr.rel (0) target = $region25
    $region24: #{tpu_custom_call.1} parent=1 // pred_region
      _
    $region25: #{tpu_custom_call.1} parent=1 // pred_fallthru
      _
    // Predicated region
    $region26: #{tpu_custom_call.1} parent=1 // pred_check
      _
    $region27: #{tpu_custom_call.1} parent=1 // pred_check_branch
      %28 = sbr.rel (0) target = $region29
    $region28: #{tpu_custom_call.1} parent=1 // pred_region
      _
    $region29: #{tpu_custom_call.1} parent=1 // pred_fallthru
      _
    %v29 = vld [vmem:[%s1] sm:$0xff]
    %v30 = vld [vmem:[%s2] sm:$0xff]
    %v31 = vld [vmem:[%s2 + $0x8] sm:$0xff]
    %v32 = vld [vmem:[%s2 + $0x10] sm:$0xff]
    %v33 = vld [vmem:[%s2 + $0x18] sm:$0xff]
    %v34 = vld [vmem:[%s2 + $0x20] sm:$0xff]
    %v35 = vld [vmem:[%s2 + $0x28] sm:$0xff]
    %v36 = vld [vmem:[%s2 + $0x30] sm:$0xff]
    %v37 = vld [vmem:[%s2 + $0x38] sm:$0xff]
    %v38 = vld [vmem:[%s3] sm:$0xff]
    %v39 = vld [vmem:[%s3 + $0x8] sm:$0xff]
    %v40 = vld [vmem:[%s3 + $0x10] sm:$0xff]
    %v41 = vld [vmem:[%s3 + $0x18] sm:$0xff]
    %v42 = vld [vmem:[%s3 + $0x20] sm:$0xff]
    %v43 = vld [vmem:[%s3 + $0x28] sm:$0xff]
    %v44 = vld [vmem:[%s3 + $0x30] sm:$0xff]
    %v45 = vld [vmem:[%s3 + $0x38] sm:$0xff]
    %47 = vset.pattern.permute.xlu0 0
    %48 = vperm.xlu0 %47, %v38
    %v49 = vpop.permute.xlu0 %48
    %52 = vset.pattern.permute.xlu0 0
    %53 = vperm.xlu0 %52, %v39
    %v54 = vpop.permute.xlu0 %53
    %57 = vset.pattern.permute.xlu0 0
    %58 = vperm.xlu0 %57, %v40
    %v59 = vpop.permute.xlu0 %58
    %62 = vset.pattern.permute.xlu0 0
    %63 = vperm.xlu0 %62, %v41
    %v64 = vpop.permute.xlu0 %63
    %67 = vset.pattern.permute.xlu0 0
    %68 = vperm.xlu0 %67, %v42
    %v69 = vpop.permute.xlu0 %68
    %72 = vset.pattern.permute.xlu0 0
    %73 = vperm.xlu0 %72, %v43
    %v74 = vpop.permute.xlu0 %73
    %77 = vset.pattern.permute.xlu0 0
    %78 = vperm.xlu0 %77, %v44
    %v79 = vpop.permute.xlu0 %78
    %82 = vset.pattern.permute.xlu0 0
    %83 = vperm.xlu0 %82, %v45
    %v84 = vpop.permute.xlu0 %83
    %vm86 = vcmask 130048
    %v88 = vsel %vm86, %v30, 0
    %v91 = vsel %vm86, %v31, 0
    %v94 = vsel %vm86, %v32, 0
    %v97 = vsel %vm86, %v33, 0
    %v100 = vsel %vm86, %v34, 0
    %v103 = vsel %vm86, %v35, 0
    %v106 = vsel %vm86, %v36, 0
    %v109 = vsel %vm86, %v37, 0
    %v112 = vsel %vm86, %v29, 0
    %114 = vmatprep.subr.mxu0 0.0
    %115 = vmatpush1.xpose.msra.mxu0 0.0
    %116 = vmatprep.subr.mxu0 0.0
    %117 = vmatpush1.xpose.msra.mxu0 0.0
    %118 = vmatprep.subr.mxu0 0.0
    %119 = vmatpush1.xpose.msra.mxu0 0.0
    %120 = vmatprep.subr.mxu0 0.0
    %121 = vmatpush1.xpose.msra.mxu0 0.0
    %122 = vmatprep.subr.mxu0 0.0
    %123 = vmatpush1.xpose.msra.mxu0 0.0
    %124 = vmatprep.subr.mxu0 0.0
    %125 = vmatpush1.xpose.msra.mxu0 0.0
    %126 = vmatprep.subr.mxu0 0.0
    %127 = vmatpush1.xpose.msra.mxu0 0.0
    %128 = vmatprep.subr.mxu0 0.0
    %129 = vmatpush1.xpose.msra.mxu0 0.0
    %130 = vmatprep.subr.mxu0 0.0
    %131 = vmatpush1.xpose.msra.mxu0 0.0
    %132 = vmatprep.subr.mxu0 0.0
    %133 = vmatpush1.xpose.msra.mxu0 0.0
    %134 = vmatprep.subr.mxu0 0.0
    %135 = vmatpush1.xpose.msra.mxu0 0.0
    %136 = vmatprep.subr.mxu0 0.0
    %137 = vmatpush1.xpose.msra.mxu0 0.0
    %138 = vmatprep.subr.mxu0 0.0
    %139 = vmatpush1.xpose.msra.mxu0 0.0
    %140 = vmatprep.subr.mxu0 0.0
    %141 = vmatpush1.xpose.msra.mxu0 0.0
    %142 = vmatprep.subr.mxu0 0.0
    %143 = vmatpush1.xpose.msra.mxu0 0.0
    %144 = vmatprep.subr.mxu0 0.0
    %145 = vmatpush1.xpose.msra.mxu0 %v112
    %146 = vmatprep.subr.mxu0 0.0
    %147 = vmatpush2.xpose.msra.mxu0 0.0
    %148 = vmatprep.subr.mxu0 0.0
    %149 = vmatpush2.xpose.msra.mxu0 0.0
    %150 = vmatprep.subr.mxu0 0.0
    %151 = vmatpush2.xpose.msra.mxu0 0.0
    %152 = vmatprep.subr.mxu0 0.0
    %153 = vmatpush2.xpose.msra.mxu0 0.0
    %154 = vmatprep.subr.mxu0 0.0
    %155 = vmatpush2.xpose.msra.mxu0 0.0
    %156 = vmatprep.subr.mxu0 0.0
    %157 = vmatpush2.xpose.msra.mxu0 0.0
    %158 = vmatprep.subr.mxu0 0.0
    %159 = vmatpush2.xpose.msra.mxu0 0.0
    %160 = vmatprep.subr.mxu0 0.0
    %161 = vmatpush2.xpose.msra.mxu0 0.0
    %162 = vmatprep.subr.mxu0 0.0
    %163 = vmatpush2.xpose.msra.mxu0 0.0
    %164 = vmatprep.subr.mxu0 0.0
    %165 = vmatpush2.xpose.msra.mxu0 0.0
    %166 = vmatprep.subr.mxu0 0.0
    %167 = vmatpush2.xpose.msra.mxu0 0.0
    %168 = vmatprep.subr.mxu0 0.0
    %169 = vmatpush2.xpose.msra.mxu0 0.0
    %170 = vmatprep.subr.mxu0 0.0
    %171 = vmatpush2.xpose.msra.mxu0 0.0
    %172 = vmatprep.subr.mxu0 0.0
    %173 = vmatpush2.xpose.msra.mxu0 0.0
    %174 = vmatprep.subr.mxu0 0.0
    %175 = vmatpush2.xpose.msra.mxu0 0.0
    %176 = vmatprep.subr.mxu0 0.0
    %177 = vmatpush2.xpose.msra.mxu0 0.0
    %178 = vmatprep.mubr.f32.mxu0 0.0
    %179 = vmatmul.mubr.f32.gmra.mxu0 %v88
    %v180 = vpop.f32.mrf.mxu0
    %v181 = vadd.f32 %v49, %v180
    %v182 = vpop.f32.mrf.mxu0
    %183 = vmatprep.mubr.f32.mxu0 0.0
    %184 = vmatmul.mubr.f32.gmra.mxu0 %v91
    %v185 = vpop.f32.mrf.mxu0
    %v186 = vadd.f32 %v54, %v185
    %v187 = vpop.f32.mrf.mxu0
    %188 = vmatprep.mubr.f32.mxu0 0.0
    %189 = vmatmul.mubr.f32.gmra.mxu0 %v94
    %v190 = vpop.f32.mrf.mxu0
    %v191 = vadd.f32 %v59, %v190
    %v192 = vpop.f32.mrf.mxu0
    %193 = vmatprep.mubr.f32.mxu0 0.0
    %194 = vmatmul.mubr.f32.gmra.mxu0 %v97
    %v195 = vpop.f32.mrf.mxu0
    %v196 = vadd.f32 %v64, %v195
    %v197 = vpop.f32.mrf.mxu0
    %198 = vmatprep.mubr.f32.mxu0 0.0
    %199 = vmatmul.mubr.f32.gmra.mxu0 %v100
    %v200 = vpop.f32.mrf.mxu0
    %v201 = vadd.f32 %v69, %v200
    %v202 = vpop.f32.mrf.mxu0
    %203 = vmatprep.mubr.f32.mxu0 0.0
    %204 = vmatmul.mubr.f32.gmra.mxu0 %v103
    %v205 = vpop.f32.mrf.mxu0
    %v206 = vadd.f32 %v74, %v205
    %v207 = vpop.f32.mrf.mxu0
    %208 = vmatprep.mubr.f32.mxu0 0.0
    %209 = vmatmul.mubr.f32.gmra.mxu0 %v106
    %v210 = vpop.f32.mrf.mxu0
    %v211 = vadd.f32 %v79, %v210
    %v212 = vpop.f32.mrf.mxu0
    %213 = vmatprep.mubr.f32.mxu0 0.0
    %214 = vmatmul.mubr.f32.gmra.mxu0 %v109
    %v215 = vpop.f32.mrf.mxu0
    %v216 = vadd.f32 %v84, %v215
    %v217 = vpop.f32.mrf.mxu0
    %218 = vdwg.mxu0
    %v219 = vmax.f32 %v181, 0.0
    %v220 = vmax.f32 %v186, 0.0
    %v221 = vmax.f32 %v191, 0.0
    %v222 = vmax.f32 %v196, 0.0
    %v223 = vmax.f32 %v201, 0.0
    %v224 = vmax.f32 %v206, 0.0
    %v225 = vmax.f32 %v211, 0.0
    %v226 = vmax.f32 %v216, 0.0
    %v227 = vld [vmem:[%s4] sm:$0xff]
    %v228 = vld [vmem:[%s4 + $0x8] sm:$0xff]
    %v229 = vld [vmem:[%s4 + $0x10] sm:$0xff]
    %v230 = vld [vmem:[%s4 + $0x18] sm:$0xff]
    %v231 = vld [vmem:[%s5] sm:$0xff]
    %v232 = vld [vmem:[%s5 + $0x8] sm:$0xff]
    %v233 = vld [vmem:[%s5 + $0x10] sm:$0xff]
    %v234 = vld [vmem:[%s5 + $0x18] sm:$0xff]
    %236 = vset.pattern.permute.xlu0 0
    %237 = vperm.xlu0 %236, %v231
    %v238 = vpop.permute.xlu0 %237
    %241 = vset.pattern.permute.xlu0 0
    %242 = vperm.xlu0 %241, %v232
    %v243 = vpop.permute.xlu0 %242
    %246 = vset.pattern.permute.xlu0 0
    %247 = vperm.xlu0 %246, %v233
    %v248 = vpop.permute.xlu0 %247
    %251 = vset.pattern.permute.xlu0 0
    %252 = vperm.xlu0 %251, %v234
    %v253 = vpop.permute.xlu0 %252
    %vm255 = vcmask 523264
    %v257 = vsel %vm255, %v227, 0
    %v260 = vsel %vm255, %v228, 0
    %v263 = vsel %vm255, %v229, 0
    %v266 = vsel %vm255, %v230, 0
    %268 = vmatprep.subr.mxu0 0.0
    %269 = vmatpush1.msra.mxu0 0.0
    %270 = vmatprep.subr.mxu0 0.0
    %271 = vmatpush1.msra.mxu0 0.0
    %272 = vmatprep.subr.mxu0 0.0
    %273 = vmatpush1.msra.mxu0 0.0
    %274 = vmatprep.subr.mxu0 0.0
    %275 = vmatpush1.msra.mxu0 0.0
    %276 = vmatprep.subr.mxu0 0.0
    %277 = vmatpush1.msra.mxu0 0.0
    %278 = vmatprep.subr.mxu0 0.0
    %279 = vmatpush1.msra.mxu0 0.0
    %280 = vmatprep.subr.mxu0 0.0
    %281 = vmatpush1.msra.mxu0 0.0
    %282 = vmatprep.subr.mxu0 0.0
    %283 = vmatpush1.msra.mxu0 0.0
    %284 = vmatprep.subr.mxu0 0.0
    %285 = vmatpush1.msra.mxu0 %v226
    %286 = vmatprep.subr.mxu0 0.0
    %287 = vmatpush1.msra.mxu0 %v225
    %288 = vmatprep.subr.mxu0 0.0
    %289 = vmatpush1.msra.mxu0 %v224
    %290 = vmatprep.subr.mxu0 0.0
    %291 = vmatpush1.msra.mxu0 %v223
    %292 = vmatprep.subr.mxu0 0.0
    %293 = vmatpush1.msra.mxu0 %v222
    %294 = vmatprep.subr.mxu0 0.0
    %295 = vmatpush1.msra.mxu0 %v221
    %296 = vmatprep.subr.mxu0 0.0
    %297 = vmatpush1.msra.mxu0 %v220
    %298 = vmatprep.subr.mxu0 0.0
    %299 = vmatpush1.msra.mxu0 %v219
    %300 = vmatprep.subr.mxu0 0.0
    %301 = vmatpush2.msra.mxu0 0.0
    %302 = vmatprep.subr.mxu0 0.0
    %303 = vmatpush2.msra.mxu0 0.0
    %304 = vmatprep.subr.mxu0 0.0
    %305 = vmatpush2.msra.mxu0 0.0
    %306 = vmatprep.subr.mxu0 0.0
    %307 = vmatpush2.msra.mxu0 0.0
    %308 = vmatprep.subr.mxu0 0.0
    %309 = vmatpush2.msra.mxu0 0.0
    %310 = vmatprep.subr.mxu0 0.0
    %311 = vmatpush2.msra.mxu0 0.0
    %312 = vmatprep.subr.mxu0 0.0
    %313 = vmatpush2.msra.mxu0 0.0
    %314 = vmatprep.subr.mxu0 0.0
    %315 = vmatpush2.msra.mxu0 0.0
    %316 = vmatprep.subr.mxu0 0.0
    %317 = vmatpush2.msra.mxu0 0.0
    %318 = vmatprep.subr.mxu0 0.0
    %319 = vmatpush2.msra.mxu0 0.0
    %320 = vmatprep.subr.mxu0 0.0
    %321 = vmatpush2.msra.mxu0 0.0
    %322 = vmatprep.subr.mxu0 0.0
    %323 = vmatpush2.msra.mxu0 0.0
    %324 = vmatprep.subr.mxu0 0.0
    %325 = vmatpush2.msra.mxu0 0.0
    %326 = vmatprep.subr.mxu0 0.0
    %327 = vmatpush2.msra.mxu0 0.0
    %328 = vmatprep.subr.mxu0 0.0
    %329 = vmatpush2.msra.mxu0 0.0
    %330 = vmatprep.subr.mxu0 0.0
    %331 = vmatpush2.msra.mxu0 0.0
    %332 = vmatprep.mubr.f32.mxu0 0.0
    %333 = vmatmul.mubr.f32.gmra.mxu0 %v257
    %v334 = vpop.f32.mrf.mxu0
    %v335 = vadd.f32 %v238, %v334
    %v336 = vpop.f32.mrf.mxu0
    %337 = vmatprep.mubr.f32.mxu0 0.0
    %338 = vmatmul.mubr.f32.gmra.mxu0 %v260
    %v339 = vpop.f32.mrf.mxu0
    %v340 = vadd.f32 %v243, %v339
    %v341 = vpop.f32.mrf.mxu0
    %342 = vmatprep.mubr.f32.mxu0 0.0
    %343 = vmatmul.mubr.f32.gmra.mxu0 %v263
    %v344 = vpop.f32.mrf.mxu0
    %v345 = vadd.f32 %v248, %v344
    %v346 = vpop.f32.mrf.mxu0
    %347 = vmatprep.mubr.f32.mxu0 0.0
    %348 = vmatmul.mubr.f32.gmra.mxu0 %v266
    %v349 = vpop.f32.mrf.mxu0
    %v350 = vadd.f32 %v253, %v349
    %v351 = vpop.f32.mrf.mxu0
    %352 = vdwg.mxu0
    %v353 = vmax.f32 %v335, 0.0
    %v354 = vmax.f32 %v340, 0.0
    %v355 = vmax.f32 %v345, 0.0
    %v356 = vmax.f32 %v350, 0.0
    %v357 = vld [vmem:[%s6] sm:$0xff]
    %v358 = vld [vmem:[%s7] sm:$0xff]
    %360 = vset.pattern.permute.xlu0 0
    %361 = vperm.xlu0 %360, %v358
    %v362 = vpop.permute.xlu0 %361
    %vm364 = vcmask 261120
    %v366 = vsel %vm364, %v357, 0
    %368 = vmatprep.subr.mxu0 0.0
    %369 = vmatpush1.msra.mxu0 0.0
    %370 = vmatprep.subr.mxu0 0.0
    %371 = vmatpush1.msra.mxu0 0.0
    %372 = vmatprep.subr.mxu0 0.0
    %373 = vmatpush1.msra.mxu0 0.0
    %374 = vmatprep.subr.mxu0 0.0
    %375 = vmatpush1.msra.mxu0 0.0
    %376 = vmatprep.subr.mxu0 0.0
    %377 = vmatpush1.msra.mxu0 0.0
    %378 = vmatprep.subr.mxu0 0.0
    %379 = vmatpush1.msra.mxu0 0.0
    %380 = vmatprep.subr.mxu0 0.0
    %381 = vmatpush1.msra.mxu0 0.0
    %382 = vmatprep.subr.mxu0 0.0
    %383 = vmatpush1.msra.mxu0 0.0
    %384 = vmatprep.subr.mxu0 0.0
    %385 = vmatpush1.msra.mxu0 0.0
    %386 = vmatprep.subr.mxu0 0.0
    %387 = vmatpush1.msra.mxu0 0.0
    %388 = vmatprep.subr.mxu0 0.0
    %389 = vmatpush1.msra.mxu0 0.0
    %390 = vmatprep.subr.mxu0 0.0
    %391 = vmatpush1.msra.mxu0 0.0
    %392 = vmatprep.subr.mxu0 0.0
    %393 = vmatpush1.msra.mxu0 %v356
    %394 = vmatprep.subr.mxu0 0.0
    %395 = vmatpush1.msra.mxu0 %v355
    %396 = vmatprep.subr.mxu0 0.0
    %397 = vmatpush1.msra.mxu0 %v354
    %398 = vmatprep.subr.mxu0 0.0
    %399 = vmatpush1.msra.mxu0 %v353
    %400 = vmatprep.subr.mxu0 0.0
    %401 = vmatpush2.msra.mxu0 0.0
    %402 = vmatprep.subr.mxu0 0.0
    %403 = vmatpush2.msra.mxu0 0.0
    %404 = vmatprep.subr.mxu0 0.0
    %405 = vmatpush2.msra.mxu0 0.0
    %406 = vmatprep.subr.mxu0 0.0
    %407 = vmatpush2.msra.mxu0 0.0
    %408 = vmatprep.subr.mxu0 0.0
    %409 = vmatpush2.msra.mxu0 0.0
    %410 = vmatprep.subr.mxu0 0.0
    %411 = vmatpush2.msra.mxu0 0.0
    %412 = vmatprep.subr.mxu0 0.0
    %413 = vmatpush2.msra.mxu0 0.0
    %414 = vmatprep.subr.mxu0 0.0
    %415 = vmatpush2.msra.mxu0 0.0
    %416 = vmatprep.subr.mxu0 0.0
    %417 = vmatpush2.msra.mxu0 0.0
    %418 = vmatprep.subr.mxu0 0.0
    %419 = vmatpush2.msra.mxu0 0.0
    %420 = vmatprep.subr.mxu0 0.0
    %421 = vmatpush2.msra.mxu0 0.0
    %422 = vmatprep.subr.mxu0 0.0
    %423 = vmatpush2.msra.mxu0 0.0
    %424 = vmatprep.subr.mxu0 0.0
    %425 = vmatpush2.msra.mxu0 0.0
    %426 = vmatprep.subr.mxu0 0.0
    %427 = vmatpush2.msra.mxu0 0.0
    %428 = vmatprep.subr.mxu0 0.0
    %429 = vmatpush2.msra.mxu0 0.0
    %430 = vmatprep.subr.mxu0 0.0
    %431 = vmatpush2.msra.mxu0 0.0
    %432 = vmatprep.mubr.f32.mxu0 0.0
    %433 = vmatmul.mubr.f32.gmra.mxu0 %v366
    %v434 = vpop.f32.mrf.mxu0
    %v435 = vadd.f32 %v362, %v434
    %v436 = vpop.f32.mrf.mxu0
    %437 = vdwg.mxu0
    %v438 = vmul.f32 %v435, 1.442695
    %v439 = vpow.pop %v438
    %s440 = sld [smem:[#allocation3]]
    %v441 = vstv %s440
    %v442 = vmul.f32 %v439, %v441
    %v444 = vrot.slane %v442, 4
    %v446 = vadd.f32 %v435, %v444
    %s447 = smul.f32 %s440, -0.5
    %s448 = smul.f32 %s447, %s440
    %s449 = sadd.f32 %s448, -0.9189385
    %v450 = vstv %s449
    %v451 = vsub.f32 %v450, %v435
    %v452 = vtanh.pop %v446
    %v453 = vmul.f32 %v452, %v452
    %v454 = vsub.f32 1.0, %v453
    %v455 = vadd.f32 %v454, 1e-06
    %v456 = vlog2.pop %v455
    %v457 = vmul.f32 %v456, 0.6931472
    %v459 = vrot.slane %v457, 4
    %v461 = vsub.f32 %v451, %v459
    %v462 = vmul.f32 %v452, 2.0
    %v463 = vsub.f32 %v461, 0.6931472
    %vm464 = vcmask 60416
    %465 = vst.msk [vmem:[#allocation4] sm:$0xf] %vm464, %v462
    %vm466 = vcmask 64516
    %467 = vst.msk [vmem:[#allocation4] sm:$0xf0] %vm466, %v463
    // Predicated region
    $region30: #{tpu_custom_call.1} parent=1 // pred_check
      _
    $region31: #{tpu_custom_call.1} parent=1 // pred_check_branch
      %469 = sbr.rel (0) target = $region33
    $region32: #{tpu_custom_call.1} parent=1 // pred_region
      %s471 = ssub.s32 128, 128
      %472 = vsyncadd [#allocation5], %s471
      %s474 = sshll.u32 [#allocation4], 4
      %s475 = int_to_ptr.vmem [resolvable:$true] %s474
      %477 = dma.vmem_to_hbm [thread:$0]  %s475, 128, %s8, [#allocation5]
    $region33: #{tpu_custom_call.1} parent=1 // pred_fallthru
      _
    // Predicated region
    $region34: #{tpu_custom_call.1} parent=1 // pred_check
      _
    $region35: #{tpu_custom_call.1} parent=1 // pred_check_branch
      %479 = sbr.rel (0) target = $region37
    $region36: #{tpu_custom_call.1} parent=1 // pred_region
      %480 = dma.done [#allocation5], 128
    $region37: #{tpu_custom_call.1} parent=1 // pred_fallthru
      _
    %481 = vsyncpa [#allocation5], 1

</llo_original>
